<compile_context>
chip_gen: v7x
topology: tpu7x:2x2x1
jax: 0.10.0
libtpu: 0.0.40
codegen_flags: <defaults>
</compile_context>

<pallas_src>
import jax
import jax.numpy as jnp
import numpy as np
from jax import lax
from jax.experimental import pallas as pl
from jax.experimental.pallas import tpu as pltpu

# ----------------- module config (small synthetic sizes) -----------------
B = 2
N_POINTS = 64
IN_CHANNELS = 4
NUM_CENTROIDS = 16
RADIUS_LIST = (0.25, 0.5)
NUM_NEIGHBOURS_LIST = (8, 16)
MLP_CHANNELS_LIST = ((16, 16, 32), (16, 16, 32))
USE_XYZ = True
BN_EPS = 1e-5


# ----------------- plain-JAX glue: sampling / grouping -----------------
def farthest_point_sample(xyz, num_centroids):
    """xyz: (B, 3, N) -> indices (B, num_centroids). Starts from index 0."""
    Bb, _, N = xyz.shape
    pts = jnp.transpose(xyz, (0, 2, 1))  # (B, N, 3)

    def body(i, state):
        idx, dists, last = state
        last_pt = jnp.take_along_axis(pts, last[:, None, None], axis=1)  # (B,1,3)
        d = jnp.sum((pts - last_pt) ** 2, axis=-1)                        # (B,N)
        dists = jnp.minimum(dists, d)
        nxt = jnp.argmax(dists, axis=-1).astype(jnp.int32)
        idx = idx.at[:, i].set(nxt)
        return idx, dists, nxt

    idx0 = jnp.zeros((Bb, num_centroids), jnp.int32)
    dists0 = jnp.full((Bb, N), 1e10, jnp.float32)
    last0 = jnp.zeros((Bb,), jnp.int32)
    idx, _, _ = lax.fori_loop(1, num_centroids, body, (idx0, dists0, last0))
    return idx


def gather_points(data, index):
    """data: (B, C, N), index: (B, S) -> (B, C, S)."""
    Bb, C, _ = data.shape
    S = index.shape[1]
    idx = jnp.broadcast_to(index[:, None, :], (Bb, C, S))
    return jnp.take_along_axis(data, idx, axis=2)


def ball_query(xyz, new_xyz, radius, K):
    """xyz: (B,3,N), new_xyz: (B,3,S) -> indices (B, S, K).

    First K points (in index order) within `radius`, padded with the first
    found index (0 if none) — matches the usual CUDA ball_query semantics.
    Padding with duplicates is safe here only because max-pooling is
    idempotent under duplicates.
    """
    pts = jnp.transpose(xyz, (0, 2, 1))       # (B,N,3)
    ctr = jnp.transpose(new_xyz, (0, 2, 1))   # (B,S,3)
    d2 = jnp.sum((ctr[:, :, None, :] - pts[:, None, :, :]) ** 2, axis=-1)  # (B,S,N)
    N = pts.shape[1]
    cand = jnp.where(d2 <= radius ** 2, jnp.arange(N)[None, None, :], N)
    sorted_idx = jnp.sort(cand, axis=-1)[:, :, :K]            # (B,S,K)
    first = sorted_idx[:, :, :1]
    idx = jnp.where(sorted_idx == N, first, sorted_idx)
    idx = jnp.where(first == N, 0, idx)
    return idx.astype(jnp.int32)


# ----------------- Pallas kernel: fused MSG SharedMLPs + max over K -----------------
def _make_fused_msg_kernel(layer_dims_list, c_last_list, out_lanes):
    """layer_dims_list[si] = [(c_in, c_out), ...] per layer of scale si."""
    num_scales = len(layer_dims_list)

    def kernel(*refs):
        o_ref = refs[-1]                       # (sum(c_last), B*S) f32
        x_refs = refs[:num_scales]             # per scale: (C_in, K_i*B*S) bf16
        slab_refs = refs[num_scales:-1]        # per scale: packed (rows, cmax+1) f32

        off = 0
        for si in range(num_scales):
            h = x_refs[si][...]                # bf16
            row = 0
            for (c_in, c_out) in layer_dims_list[si]:
                # static slices of the packed weight slab: [w | b]
                w = slab_refs[si][row:row + c_out, 0:c_in].astype(jnp.bfloat16)
                b = slab_refs[si][row:row + c_out, c_in:c_in + 1]   # f32 (c_out,1)
                row += c_out
                acc = jnp.dot(w, h.astype(jnp.bfloat16),
                              preferred_element_type=jnp.float32)
                h = jnp.maximum(acc + b, 0.0)  # f32 (c_out, lanes)
            # max over K: lanes are k-major (lane = k*(B*S) + b*S + s), so a
            # log2(K) halving tree over the lane axis reduces neighbours while
            # keeping each (b, s) column in place.
            while h.shape[1] > out_lanes:
                half = h.shape[1] // 2
                h = jnp.maximum(h[:, :half], h[:, half:])
            c = c_last_list[si]
            o_ref[off:off + c, :] = h          # (c_last, B*S)
            off += c

    return kernel


def msg_mlp_max_pallas(x_list, params, batch, S):
    """x_list[si]: (C_in, K_i*B*S) bfloat16, lanes k-major / b / s-minor.
    params[si]: list of (w, b) per layer, b shaped (c_out, 1), f32.
    Returns (sum(c_last), B*S) float32."""
    out_lanes = batch * S
    c_last_list = [layers[-1][0].shape[0] for layers in params]
    c_out_total = sum(c_last_list)

    layer_dims_list = []
    slabs = []
    for layers in params:
        dims = [(w.shape[1], w.shape[0]) for w, _ in layers]
        rows = sum(c_out for _, c_out in dims)
        cols = max(c_in for c_in, _ in dims) + 1
        slab = jnp.zeros((rows, cols), jnp.float32)
        r = 0
        for w, bias in layers:
            c_out, c_in = w.shape
            slab = slab.at[r:r + c_out, :c_in].set(w)
            slab = slab.at[r:r + c_out, c_in].set(bias[:, 0])
            r += c_out
        layer_dims_list.append(dims)
        slabs.append(slab)

    for x in x_list:
        k = x.shape[1] // out_lanes
        assert k * out_lanes == x.shape[1] and (k & (k - 1)) == 0, \
            "num_neighbours must be a power of two for the in-kernel max tree"

    args = list(x_list) + slabs
    in_specs = [pl.BlockSpec(a.shape, lambda i: (0, 0)) for a in args]

    return pl.pallas_call(
        _make_fused_msg_kernel(layer_dims_list, c_last_list, out_lanes),
        out_shape=jax.ShapeDtypeStruct((c_out_total, out_lanes), jnp.float32),
        grid_spec=pltpu.PrefetchScalarGridSpec(
            num_scalar_prefetch=0,
            grid=(1,),                      # single step: B folded onto lanes
            in_specs=in_specs,
            out_specs=pl.BlockSpec((c_out_total, out_lanes), lambda i: (0, 0)),
        ),
        compiler_params=pltpu.CompilerParams(
            dimension_semantics=("arbitrary",)),
    )(*args)


# ----------------- parameters (deterministic, BN folded in eval mode) -----------------
def init_params(key):
    params = []
    in_ch = IN_CHANNELS + (3 if USE_XYZ else 0)
    for mlp_channels in MLP_CHANNELS_LIST:
        layers = []
        c_prev = in_ch
        for c_out in mlp_channels:
            key, kw, kb, kg, kbt = jax.random.split(key, 5)
            w = 0.1 * jax.random.normal(kw, (c_out, c_prev), jnp.float32)
            conv_b = 0.01 * jax.random.normal(kb, (c_out,), jnp.float32)
            gamma = 1.0 + 0.1 * jax.random.normal(kg, (c_out,), jnp.float32)
            beta = 0.05 * jax.random.normal(kbt, (c_out,), jnp.float32)
            run_mean = jnp.zeros((c_out,), jnp.float32)
            run_var = jnp.ones((c_out,), jnp.float32)
            # fold eval-mode BatchNorm into the 1x1 conv
            scale = gamma / jnp.sqrt(run_var + BN_EPS)
            w_eff = w * scale[:, None]
            b_eff = (conv_b - run_mean) * scale + beta
            layers.append((w_eff, b_eff.reshape(c_out, 1)))
            c_prev = c_out
        params.append(layers)
    return params


# ----------------- full module forward -----------------
def pointnet_sa_msg_forward(xyz, feature, params, use_pallas=True):
    Bb, _, N = xyz.shape
    S = NUM_CENTROIDS
    idx = farthest_point_sample(xyz, S)
    new_xyz = gather_points(xyz, idx)                          # (B, 3, S)

    # (B, C, N) -> (C, B*N) views so the grouped gather can write the kernel
    # lane layout (k-major, then batch, then centroid) directly.
    xyz_flat = jnp.transpose(xyz, (1, 0, 2)).reshape(3, Bb * N)
    feat_flat = jnp.transpose(feature, (1, 0, 2)).reshape(feature.shape[1], Bb * N)
    ctr_flat = jnp.transpose(new_xyz, (1, 0, 2)).reshape(3, Bb * S)   # col = b*S+s

    x_list = []
    for radius, K in zip(RADIUS_LIST, NUM_NEIGHBOURS_LIST):
        nbr_idx = ball_query(xyz, new_xyz, radius, K)          # (B, S, K)
        base = (jnp.arange(Bb, dtype=jnp.int32) * N)[:, None, None]   # (B,1,1)
        # lane = k*(B*S) + b*S + s  ->  flat source column b*N + idx[b,s,k]
        flat_idx = jnp.transpose(nbr_idx + base, (2, 0, 1)).reshape(K * Bb * S)
        g_xyz = jnp.take(xyz_flat, flat_idx, axis=1) - jnp.tile(ctr_flat, (1, K))
        g_feat = jnp.take(feat_flat, flat_idx, axis=1)         # (C, K*B*S)
        g = jnp.concatenate([g_xyz, g_feat], axis=0) if USE_XYZ else g_feat
        x_list.append(g)                                       # f32 (C_in, K*B*S)

    if use_pallas:
        out_flat = msg_mlp_max_pallas(
            [x.astype(jnp.bfloat16) for x in x_list], params, Bb, S)
    else:
        # pure-JAX f32 reference of the same math
        outs = []
        for x, layers in zip(x_list, params):
            h = x
            for w, bvec in layers:
                h = jnp.maximum(jnp.dot(w, h) + bvec, 0.0)
            K = h.shape[1] // (Bb * S)
            outs.append(h.reshape(h.shape[0], K, Bb * S).max(axis=1))
        out_flat = jnp.concatenate(outs, axis=0)               # (c_out_total, B*S)

    new_feature = jnp.transpose(out_flat.reshape(-1, Bb, S), (1, 0, 2))
    return new_xyz, new_feature


if __name__ == "__main__":
    key = jax.random.PRNGKey(0)
    k_xyz, k_feat, k_par = jax.random.split(key, 3)
    xyz = jax.random.uniform(k_xyz, (B, 3, N_POINTS), dtype=jnp.float32)
    feature = jax.random.normal(k_feat, (B, IN_CHANNELS, N_POINTS), dtype=jnp.float32)
    params = init_params(k_par)

    new_xyz, new_feature = pointnet_sa_msg_forward(xyz, feature, params, use_pallas=True)
    jax.block_until_ready((new_xyz, new_feature))

    # verify against a pure-JAX f32 reference of the same forward
    # (tolerance loosened for the kernel's bf16 MXU inputs)
    ref_xyz, ref_feature = pointnet_sa_msg_forward(xyz, feature, params, use_pallas=False)
    np.testing.assert_allclose(np.asarray(new_xyz), np.asarray(ref_xyz),
                               rtol=1e-5, atol=1e-5)
    np.testing.assert_allclose(np.asarray(new_feature), np.asarray(ref_feature),
                               rtol=2e-2, atol=2e-2)

    assert new_xyz.shape == (B, 3, NUM_CENTROIDS)
    assert new_feature.shape == (B, sum(m[-1] for m in MLP_CHANNELS_LIST), NUM_CENTROIDS)
    print("KERNEL_OK")
</pallas_src>

<mosaic_0001>
module attributes {stable_mosaic.version = 11 : i64} {
  func.func @kernel(%arg0: i32, %arg1: memref<7x256xbf16, #tpu.memory_space<vmem>>, %arg2: memref<7x512xbf16, #tpu.memory_space<vmem>>, %arg3: memref<64x17xf32, #tpu.memory_space<vmem>>, %arg4: memref<64x17xf32, #tpu.memory_space<vmem>>, %arg5: memref<64x32xf32, #tpu.memory_space<vmem>>) attributes {dimension_semantics = [#tpu.dimension_semantics<arbitrary>], iteration_bounds = array<i64: 1>, scalar_prefetch = 0 : i64, scratch_operands = 0 : i64, tpu.core_type = #tpu.core_type<tc>, window_params = [{pipeline_mode = #tpu.pipeline_mode<synchronous>, transform_indices = @transform_0, window_bounds = array<i64: 7, 256>}, {pipeline_mode = #tpu.pipeline_mode<synchronous>, transform_indices = @transform_1, window_bounds = array<i64: 7, 512>}, {pipeline_mode = #tpu.pipeline_mode<synchronous>, transform_indices = @transform_2, window_bounds = array<i64: 64, 17>}, {pipeline_mode = #tpu.pipeline_mode<synchronous>, transform_indices = @transform_3, window_bounds = array<i64: 64, 17>}, {pipeline_mode = #tpu.pipeline_mode<synchronous>, transform_indices = @transform_4, window_bounds = array<i64: 64, 32>}]} {
    %c0 = arith.constant 0 : index
    %c0_0 = arith.constant 0 : index
    %0 = vector.load %arg1[%c0, %c0_0] : memref<7x256xbf16, #tpu.memory_space<vmem>>, vector<7x256xbf16>
    %c0_1 = arith.constant 0 : index
    %c0_2 = arith.constant 0 : index
    %1 = vector.load %arg3[%c0_1, %c0_2] : memref<64x17xf32, #tpu.memory_space<vmem>>, vector<16x7xf32>
    %2 = arith.truncf %1 : vector<16x7xf32> to vector<16x7xbf16>
    %c0_3 = arith.constant 0 : index
    %c7 = arith.constant 7 : index
    %3 = vector.load %arg3[%c0_3, %c7] : memref<64x17xf32, #tpu.memory_space<vmem>>, vector<16x1xf32>
    %cst = arith.constant dense<0.000000e+00> : vector<16x256xf32>
    %4 = tpu.matmul %2, %0, %cst {dimension_numbers = #tpu.dot_dimension_numbers<[1], [0], [0], [1], [0, 0, 1, 1], [], []>} : vector<16x7xbf16>, vector<7x256xbf16>, vector<16x256xf32> -> vector<16x256xf32>
    %5 = vector.broadcast %3 : vector<16x1xf32> to vector<16x256xf32>
    %6 = arith.addf %4, %5 : vector<16x256xf32>
    %cst_4 = arith.constant 0.000000e+00 : f32
    %7 = vector.broadcast %cst_4 : f32 to vector<16x256xf32>
    %8 = arith.maximumf %6, %7 : vector<16x256xf32>
    %c16 = arith.constant 16 : index
    %c0_5 = arith.constant 0 : index
    %9 = vector.load %arg3[%c16, %c0_5] : memref<64x17xf32, #tpu.memory_space<vmem>>, vector<16x16xf32>
    %10 = arith.truncf %9 : vector<16x16xf32> to vector<16x16xbf16>
    %c16_6 = arith.constant 16 : index
    %c16_7 = arith.constant 16 : index
    %11 = vector.load %arg3[%c16_6, %c16_7] : memref<64x17xf32, #tpu.memory_space<vmem>>, vector<16x1xf32>
    %12 = arith.truncf %8 : vector<16x256xf32> to vector<16x256xbf16>
    %cst_8 = arith.constant dense<0.000000e+00> : vector<16x256xf32>
    %13 = tpu.matmul %10, %12, %cst_8 {dimension_numbers = #tpu.dot_dimension_numbers<[1], [0], [0], [1], [0, 0, 1, 1], [], []>} : vector<16x16xbf16>, vector<16x256xbf16>, vector<16x256xf32> -> vector<16x256xf32>
    %14 = vector.broadcast %11 : vector<16x1xf32> to vector<16x256xf32>
    %15 = arith.addf %13, %14 : vector<16x256xf32>
    %cst_9 = arith.constant 0.000000e+00 : f32
    %16 = vector.broadcast %cst_9 : f32 to vector<16x256xf32>
    %17 = arith.maximumf %15, %16 : vector<16x256xf32>
    %c32 = arith.constant 32 : index
    %c0_10 = arith.constant 0 : index
    %18 = vector.load %arg3[%c32, %c0_10] : memref<64x17xf32, #tpu.memory_space<vmem>>, vector<32x16xf32>
    %19 = arith.truncf %18 : vector<32x16xf32> to vector<32x16xbf16>
    %c32_11 = arith.constant 32 : index
    %c16_12 = arith.constant 16 : index
    %20 = vector.load %arg3[%c32_11, %c16_12] : memref<64x17xf32, #tpu.memory_space<vmem>>, vector<32x1xf32>
    %21 = arith.truncf %17 : vector<16x256xf32> to vector<16x256xbf16>
    %cst_13 = arith.constant dense<0.000000e+00> : vector<32x256xf32>
    %22 = tpu.matmul %19, %21, %cst_13 {dimension_numbers = #tpu.dot_dimension_numbers<[1], [0], [0], [1], [0, 0, 1, 1], [], []>} : vector<32x16xbf16>, vector<16x256xbf16>, vector<32x256xf32> -> vector<32x256xf32>
    %23 = vector.broadcast %20 : vector<32x1xf32> to vector<32x256xf32>
    %24 = arith.addf %22, %23 : vector<32x256xf32>
    %cst_14 = arith.constant 0.000000e+00 : f32
    %25 = vector.broadcast %cst_14 : f32 to vector<32x256xf32>
    %26 = arith.maximumf %24, %25 : vector<32x256xf32>
    %27 = vector.extract_strided_slice %26 {offsets = [0, 0], sizes = [32, 128], strides = [1, 1]} : vector<32x256xf32> to vector<32x128xf32>
    %28 = vector.extract_strided_slice %26 {offsets = [0, 128], sizes = [32, 128], strides = [1, 1]} : vector<32x256xf32> to vector<32x128xf32>
    %29 = arith.maximumf %27, %28 : vector<32x128xf32>
    %30 = vector.extract_strided_slice %29 {offsets = [0, 0], sizes = [32, 64], strides = [1, 1]} : vector<32x128xf32> to vector<32x64xf32>
    %31 = vector.extract_strided_slice %29 {offsets = [0, 64], sizes = [32, 64], strides = [1, 1]} : vector<32x128xf32> to vector<32x64xf32>
    %32 = arith.maximumf %30, %31 : vector<32x64xf32>
    %33 = vector.extract_strided_slice %32 {offsets = [0, 0], sizes = [32, 32], strides = [1, 1]} : vector<32x64xf32> to vector<32x32xf32>
    %34 = vector.extract_strided_slice %32 {offsets = [0, 32], sizes = [32, 32], strides = [1, 1]} : vector<32x64xf32> to vector<32x32xf32>
    %35 = arith.maximumf %33, %34 : vector<32x32xf32>
    %c0_15 = arith.constant 0 : index
    %c0_16 = arith.constant 0 : index
    %36 = vector.load %arg5[%c0_15, %c0_16] : memref<64x32xf32, #tpu.memory_space<vmem>>, vector<32x32xf32>
    tpu.vector_store %arg5[%c0_15, %c0_16], %35 {strides = array<i32>} : memref<64x32xf32, #tpu.memory_space<vmem>>, vector<32x32xf32>,
    %c0_17 = arith.constant 0 : index
    %c0_18 = arith.constant 0 : index
    %37 = vector.load %arg2[%c0_17, %c0_18] : memref<7x512xbf16, #tpu.memory_space<vmem>>, vector<7x512xbf16>
    %c0_19 = arith.constant 0 : index
    %c0_20 = arith.constant 0 : index
    %38 = vector.load %arg4[%c0_19, %c0_20] : memref<64x17xf32, #tpu.memory_space<vmem>>, vector<16x7xf32>
    %39 = arith.truncf %38 : vector<16x7xf32> to vector<16x7xbf16>
    %c0_21 = arith.constant 0 : index
    %c7_22 = arith.constant 7 : index
    %40 = vector.load %arg4[%c0_21, %c7_22] : memref<64x17xf32, #tpu.memory_space<vmem>>, vector<16x1xf32>
    %cst_23 = arith.constant dense<0.000000e+00> : vector<16x512xf32>
    %41 = tpu.matmul %39, %37, %cst_23 {dimension_numbers = #tpu.dot_dimension_numbers<[1], [0], [0], [1], [0, 0, 1, 1], [], []>} : vector<16x7xbf16>, vector<7x512xbf16>, vector<16x512xf32> -> vector<16x512xf32>
    %42 = vector.broadcast %40 : vector<16x1xf32> to vector<16x512xf32>
    %43 = arith.addf %41, %42 : vector<16x512xf32>
    %cst_24 = arith.constant 0.000000e+00 : f32
    %44 = vector.broadcast %cst_24 : f32 to vector<16x512xf32>
    %45 = arith.maximumf %43, %44 : vector<16x512xf32>
    %c16_25 = arith.constant 16 : index
    %c0_26 = arith.constant 0 : index
    %46 = vector.load %arg4[%c16_25, %c0_26] : memref<64x17xf32, #tpu.memory_space<vmem>>, vector<16x16xf32>
    %47 = arith.truncf %46 : vector<16x16xf32> to vector<16x16xbf16>
    %c16_27 = arith.constant 16 : index
    %c16_28 = arith.constant 16 : index
    %48 = vector.load %arg4[%c16_27, %c16_28] : memref<64x17xf32, #tpu.memory_space<vmem>>, vector<16x1xf32>
    %49 = arith.truncf %45 : vector<16x512xf32> to vector<16x512xbf16>
    %cst_29 = arith.constant dense<0.000000e+00> : vector<16x512xf32>
    %50 = tpu.matmul %47, %49, %cst_29 {dimension_numbers = #tpu.dot_dimension_numbers<[1], [0], [0], [1], [0, 0, 1, 1], [], []>} : vector<16x16xbf16>, vector<16x512xbf16>, vector<16x512xf32> -> vector<16x512xf32>
    %51 = vector.broadcast %48 : vector<16x1xf32> to vector<16x512xf32>
    %52 = arith.addf %50, %51 : vector<16x512xf32>
    %cst_30 = arith.constant 0.000000e+00 : f32
    %53 = vector.broadcast %cst_30 : f32 to vector<16x512xf32>
    %54 = arith.maximumf %52, %53 : vector<16x512xf32>
    %c32_31 = arith.constant 32 : index
    %c0_32 = arith.constant 0 : index
    %55 = vector.load %arg4[%c32_31, %c0_32] : memref<64x17xf32, #tpu.memory_space<vmem>>, vector<32x16xf32>
    %56 = arith.truncf %55 : vector<32x16xf32> to vector<32x16xbf16>
    %c32_33 = arith.constant 32 : index
    %c16_34 = arith.constant 16 : index
    %57 = vector.load %arg4[%c32_33, %c16_34] : memref<64x17xf32, #tpu.memory_space<vmem>>, vector<32x1xf32>
    %58 = arith.truncf %54 : vector<16x512xf32> to vector<16x512xbf16>
    %cst_35 = arith.constant dense<0.000000e+00> : vector<32x512xf32>
    %59 = tpu.matmul %56, %58, %cst_35 {dimension_numbers = #tpu.dot_dimension_numbers<[1], [0], [0], [1], [0, 0, 1, 1], [], []>} : vector<32x16xbf16>, vector<16x512xbf16>, vector<32x512xf32> -> vector<32x512xf32>
    %60 = vector.broadcast %57 : vector<32x1xf32> to vector<32x512xf32>
    %61 = arith.addf %59, %60 : vector<32x512xf32>
    %cst_36 = arith.constant 0.000000e+00 : f32
    %62 = vector.broadcast %cst_36 : f32 to vector<32x512xf32>
    %63 = arith.maximumf %61, %62 : vector<32x512xf32>
    %64 = vector.extract_strided_slice %63 {offsets = [0, 0], sizes = [32, 256], strides = [1, 1]} : vector<32x512xf32> to vector<32x256xf32>
    %65 = vector.extract_strided_slice %63 {offsets = [0, 256], sizes = [32, 256], strides = [1, 1]} : vector<32x512xf32> to vector<32x256xf32>
    %66 = arith.maximumf %64, %65 : vector<32x256xf32>
    %67 = vector.extract_strided_slice %66 {offsets = [0, 0], sizes = [32, 128], strides = [1, 1]} : vector<32x256xf32> to vector<32x128xf32>
    %68 = vector.extract_strided_slice %66 {offsets = [0, 128], sizes = [32, 128], strides = [1, 1]} : vector<32x256xf32> to vector<32x128xf32>
    %69 = arith.maximumf %67, %68 : vector<32x128xf32>
    %70 = vector.extract_strided_slice %69 {offsets = [0, 0], sizes = [32, 64], strides = [1, 1]} : vector<32x128xf32> to vector<32x64xf32>
    %71 = vector.extract_strided_slice %69 {offsets = [0, 64], sizes = [32, 64], strides = [1, 1]} : vector<32x128xf32> to vector<32x64xf32>
    %72 = arith.maximumf %70, %71 : vector<32x64xf32>
    %73 = vector.extract_strided_slice %72 {offsets = [0, 0], sizes = [32, 32], strides = [1, 1]} : vector<32x64xf32> to vector<32x32xf32>
    %74 = vector.extract_strided_slice %72 {offsets = [0, 32], sizes = [32, 32], strides = [1, 1]} : vector<32x64xf32> to vector<32x32xf32>
    %75 = arith.maximumf %73, %74 : vector<32x32xf32>
    %c32_37 = arith.constant 32 : index
    %c0_38 = arith.constant 0 : index
    %76 = vector.load %arg5[%c32_37, %c0_38] : memref<64x32xf32, #tpu.memory_space<vmem>>, vector<32x32xf32>
    tpu.vector_store %arg5[%c32_37, %c0_38], %75 {strides = array<i32>} : memref<64x32xf32, #tpu.memory_space<vmem>>, vector<32x32xf32>,
    return
  }
  func.func @transform_0(%arg0: i32) -> (i32, i32) {
    %c0_i32 = arith.constant 0 : i32
    %c0_i32_0 = arith.constant 0 : i32
    %c0_i32_1 = arith.constant 0 : i32
    return %c0_i32, %c0_i32_0 : i32, i32
  }
  func.func @transform_1(%arg0: i32) -> (i32, i32) {
    %c0_i32 = arith.constant 0 : i32
    %c0_i32_0 = arith.constant 0 : i32
    %c0_i32_1 = arith.constant 0 : i32
    return %c0_i32, %c0_i32_0 : i32, i32
  }
  func.func @transform_2(%arg0: i32) -> (i32, i32) {
    %c0_i32 = arith.constant 0 : i32
    %c0_i32_0 = arith.constant 0 : i32
    %c0_i32_1 = arith.constant 0 : i32
    return %c0_i32, %c0_i32_0 : i32, i32
  }
  func.func @transform_3(%arg0: i32) -> (i32, i32) {
    %c0_i32 = arith.constant 0 : i32
    %c0_i32_0 = arith.constant 0 : i32
    %c0_i32_1 = arith.constant 0 : i32
    return %c0_i32, %c0_i32_0 : i32, i32
  }
  func.func @transform_4(%arg0: i32) -> (i32, i32) {
    %c0_i32 = arith.constant 0 : i32
    %c0_i32_0 = arith.constant 0 : i32
    %c0_i32_1 = arith.constant 0 : i32
    return %c0_i32, %c0_i32_0 : i32, i32
  }
}

</mosaic_0001>

<llo_original>
// kernel: tpu_custom_call.1
$region0: #{tpu_custom_call.1}
  #allocation0 [shape = 'u32[]', space=smem, size = 0x4, offset = 0x4, fixed_abs, tag = 'smem constant byte address 0x4 - core index']
  #allocation1 [shape = 'u32[144,128]{1,0:T(1,128)}', space=vmem, size = 0x12000, scoped, tag = 'internal scratch']
  %s0 = inlined_call_operand.vmem [shape: bf16[7,256], index: 0, kind: input, shape index: {}]
  %s1 = inlined_call_operand.vmem [shape: bf16[7,512], index: 1, kind: input, shape index: {}]
  %s2 = inlined_call_operand.vmem [shape: f32[64,17], index: 2, kind: input, shape index: {}]
  %s3 = inlined_call_operand.vmem [shape: f32[64,17], index: 3, kind: input, shape index: {}]
  %s4 = inlined_call_operand.vmem [shape: f32[64,32], index: 4, kind: output, shape index: {}]
  %s5 = sld [smem:[#allocation0]]
  $region26: #{tpu_custom_call.1} parent=0
    _
  %s7 = ssub.s32 1, %s5
  %s8 = scalar_select 0, %s7, %s5
  // Predicated region
  $region2: #{tpu_custom_call.1} parent=0 // pred_check
    _
  $region3: #{tpu_custom_call.1} parent=0 // pred_check_branch
    %10 = sbr.rel (0) target = $region5
  $region4: #{tpu_custom_call.1} parent=0 // pred_region
    _
  $region5: #{tpu_custom_call.1} parent=0 // pred_fallthru
    _
  // Predicated region
  $region6: #{tpu_custom_call.1} parent=0 // pred_check
    _
  $region7: #{tpu_custom_call.1} parent=0 // pred_check_branch
    %12 = sbr.rel (0) target = $region9
  $region8: #{tpu_custom_call.1} parent=0 // pred_region
    _
  $region9: #{tpu_custom_call.1} parent=0 // pred_fallthru
    _
  // Predicated region
  $region10: #{tpu_custom_call.1} parent=0 // pred_check
    _
  $region11: #{tpu_custom_call.1} parent=0 // pred_check_branch
    %14 = sbr.rel (0) target = $region13
  $region12: #{tpu_custom_call.1} parent=0 // pred_region
    _
  $region13: #{tpu_custom_call.1} parent=0 // pred_fallthru
    _
  // Predicated region
  $region14: #{tpu_custom_call.1} parent=0 // pred_check
    _
  $region15: #{tpu_custom_call.1} parent=0 // pred_check_branch
    %16 = sbr.rel (0) target = $region17
  $region16: #{tpu_custom_call.1} parent=0 // pred_region
    _
  $region17: #{tpu_custom_call.1} parent=0 // pred_fallthru
    _
  %v18 = vld [vmem:[%s0] sm:$0xff]
  %v19 = vld [vmem:[%s2] sm:$0xff]
  %v20 = vld [vmem:[%s2 + $0x8] sm:$0xff]
  %v21 = vpack.c.bf16 %v20, %v19
  %23 = vset.pattern.permute.xlu0 7
  %24 = vperm.xlu0 %23, %v19
  %v25 = vpop.permute.xlu0 %24
  %28 = vset.pattern.permute.xlu0 7
  %29 = vperm.xlu0 %28, %v20
  %v30 = vpop.permute.xlu0 %29
  %v33 = vunpack.c.l.b16 %v18
  %v34 = vunpack.c.h.b16 %v18
  %v35 = vpack.c.b16 %v33, %v33
  %v36 = vpack.c.b16 %v34, %v34
  %vm37 = vcmask 56320
  %v39 = vsel %vm37, %v21, 0
  %vm41 = vcmask 1042432
  %vm42 = vcmask 1043456
  %v43 = vsel %vm41, 4294967295, 65535
  %v44 = vsel %vm42, %v43, 0
  %v46 = vand.u32 %v35, %v44
  %v49 = vand.u32 %v36, %v44
  %51 = vmatprep.subr.bf16.mxu0 %v49
  %52 = vmatpush1.bf16.msra.mxu0 %v46
  %53 = vmatprep.subr.bf16.mxu0 0
  %54 = vmatpush1.bf16.msra.mxu0 0
  %55 = vmatprep.subr.bf16.mxu0 0
  %56 = vmatpush1.bf16.msra.mxu0 0
  %57 = vmatprep.subr.bf16.mxu0 0
  %58 = vmatpush1.bf16.msra.mxu0 0
  %59 = vmatprep.subr.bf16.mxu0 0
  %60 = vmatpush1.bf16.msra.mxu0 0
  %61 = vmatprep.subr.bf16.mxu0 0
  %62 = vmatpush1.bf16.msra.mxu0 0
  %63 = vmatprep.subr.bf16.mxu0 0
  %64 = vmatpush1.bf16.msra.mxu0 0
  %65 = vmatprep.subr.bf16.mxu0 0
  %66 = vmatpush1.bf16.msra.mxu0 0
  %67 = vmatprep.subr.bf16.mxu0 0
  %68 = vmatpush1.bf16.msra.mxu0 0
  %69 = vmatprep.subr.bf16.mxu0 0
  %70 = vmatpush1.bf16.msra.mxu0 0
  %71 = vmatprep.subr.bf16.mxu0 0
  %72 = vmatpush1.bf16.msra.mxu0 0
  %73 = vmatprep.subr.bf16.mxu0 0
  %74 = vmatpush1.bf16.msra.mxu0 0
  %75 = vmatprep.subr.bf16.mxu0 0
  %76 = vmatpush1.bf16.msra.mxu0 0
  %77 = vmatprep.subr.bf16.mxu0 0
  %78 = vmatpush1.bf16.msra.mxu0 0
  %79 = vmatprep.subr.bf16.mxu0 0
  %80 = vmatpush1.bf16.msra.mxu0 0
  %81 = vmatprep.subr.bf16.mxu0 0
  %82 = vmatpush1.bf16.msra.mxu0 0
  %83 = vmatprep.mubr.bf16.mxu0 0
  %84 = vmatmul.mubr.bf16.gmra.mrb[0].mxu0 %v39
  %v85 = vpop.f32.mrb[0].mxu0
  %v86 = vadd.f32 %v25, %v85
  %v87 = vpop.f32.mrb[0].mxu0
  %v88 = vadd.f32 %v25, %v87
  %v89 = vpop.f32.mrb[0].mxu0
  %v90 = vadd.f32 %v30, %v89
  %v91 = vpop.f32.mrb[0].mxu0
  %v92 = vadd.f32 %v30, %v91
  %93 = vdwg.mxu0
  %v94 = vmax.f32 %v86, 0.0
  %v95 = vmax.f32 %v88, 0.0
  %v96 = vmax.f32 %v90, 0.0
  %v97 = vmax.f32 %v92, 0.0
  %v98 = vld [vmem:[%s2 + $0x10] sm:$0xff]
  %v99 = vld [vmem:[%s2 + $0x18] sm:$0xff]
  %v100 = vpack.c.bf16 %v99, %v98
  %v101 = vpack.c.bf16 %v96, %v94
  %v102 = vpack.c.bf16 %v97, %v95
  %104 = vset.pattern.permute.xlu0 16
  %105 = vperm.xlu0 %104, %v98
  %v106 = vpop.permute.xlu0 %105
  %109 = vset.pattern.permute.xlu0 16
  %110 = vperm.xlu0 %109, %v99
  %v111 = vpop.permute.xlu0 %110
  %vm113 = vcmask 130048
  %v115 = vsel %vm113, %v100, 0
  %117 = vmatprep.subr.bf16.mxu0 %v102
  %118 = vmatpush1.bf16.msra.mxu0 %v101
  %119 = vmatprep.subr.bf16.mxu0 0
  %120 = vmatpush1.bf16.msra.mxu0 0
  %121 = vmatprep.subr.bf16.mxu0 0
  %122 = vmatpush1.bf16.msra.mxu0 0
  %123 = vmatprep.subr.bf16.mxu0 0
  %124 = vmatpush1.bf16.msra.mxu0 0
  %125 = vmatprep.subr.bf16.mxu0 0
  %126 = vmatpush1.bf16.msra.mxu0 0
  %127 = vmatprep.subr.bf16.mxu0 0
  %128 = vmatpush1.bf16.msra.mxu0 0
  %129 = vmatprep.subr.bf16.mxu0 0
  %130 = vmatpush1.bf16.msra.mxu0 0
  %131 = vmatprep.subr.bf16.mxu0 0
  %132 = vmatpush1.bf16.msra.mxu0 0
  %133 = vmatprep.subr.bf16.mxu0 0
  %134 = vmatpush1.bf16.msra.mxu0 0
  %135 = vmatprep.subr.bf16.mxu0 0
  %136 = vmatpush1.bf16.msra.mxu0 0
  %137 = vmatprep.subr.bf16.mxu0 0
  %138 = vmatpush1.bf16.msra.mxu0 0
  %139 = vmatprep.subr.bf16.mxu0 0
  %140 = vmatpush1.bf16.msra.mxu0 0
  %141 = vmatprep.subr.bf16.mxu0 0
  %142 = vmatpush1.bf16.msra.mxu0 0
  %143 = vmatprep.subr.bf16.mxu0 0
  %144 = vmatpush1.bf16.msra.mxu0 0
  %145 = vmatprep.subr.bf16.mxu0 0
  %146 = vmatpush1.bf16.msra.mxu0 0
  %147 = vmatprep.subr.bf16.mxu0 0
  %148 = vmatpush1.bf16.msra.mxu0 0
  %149 = vmatprep.mubr.bf16.mxu0 0
  %150 = vmatmul.mubr.bf16.gmra.mrb[0].mxu0 %v115
  %v151 = vpop.f32.mrb[0].mxu0
  %v152 = vadd.f32 %v106, %v151
  %v153 = vpop.f32.mrb[0].mxu0
  %v154 = vadd.f32 %v106, %v153
  %v155 = vpop.f32.mrb[0].mxu0
  %v156 = vadd.f32 %v111, %v155
  %v157 = vpop.f32.mrb[0].mxu0
  %v158 = vadd.f32 %v111, %v157
  %159 = vdwg.mxu0
  %v160 = vmax.f32 %v152, 0.0
  %v161 = vmax.f32 %v154, 0.0
  %v162 = vmax.f32 %v156, 0.0
  %v163 = vmax.f32 %v158, 0.0
  %v164 = vld [vmem:[%s2 + $0x20] sm:$0xff]
  %v165 = vld [vmem:[%s2 + $0x28] sm:$0xff]
  %v166 = vld [vmem:[%s2 + $0x30] sm:$0xff]
  %v167 = vld [vmem:[%s2 + $0x38] sm:$0xff]
  %v168 = vpack.c.bf16 %v165, %v164
  %v169 = vpack.c.bf16 %v167, %v166
  %v170 = vpack.c.bf16 %v162, %v160
  %v171 = vpack.c.bf16 %v163, %v161
  %173 = vset.pattern.permute.xlu0 16
  %174 = vperm.xlu0 %173, %v164
  %v175 = vpop.permute.xlu0 %174
  %178 = vset.pattern.permute.xlu0 16
  %179 = vperm.xlu0 %178, %v165
  %v180 = vpop.permute.xlu0 %179
  %183 = vset.pattern.permute.xlu0 16
  %184 = vperm.xlu0 %183, %v166
  %v185 = vpop.permute.xlu0 %184
  %188 = vset.pattern.permute.xlu0 16
  %189 = vperm.xlu0 %188, %v167
  %v190 = vpop.permute.xlu0 %189
  %v193 = vsel %vm113, %v168, 0
  %v196 = vsel %vm113, %v169, 0
  %198 = vmatprep.subr.bf16.mxu0 %v171
  %199 = vmatpush1.bf16.msra.mxu0 %v170
  %200 = vmatprep.subr.bf16.mxu0 0
  %201 = vmatpush1.bf16.msra.mxu0 0
  %202 = vmatprep.subr.bf16.mxu0 0
  %203 = vmatpush1.bf16.msra.mxu0 0
  %204 = vmatprep.subr.bf16.mxu0 0
  %205 = vmatpush1.bf16.msra.mxu0 0
  %206 = vmatprep.subr.bf16.mxu0 0
  %207 = vmatpush1.bf16.msra.mxu0 0
  %208 = vmatprep.subr.bf16.mxu0 0
  %209 = vmatpush1.bf16.msra.mxu0 0
  %210 = vmatprep.subr.bf16.mxu0 0
  %211 = vmatpush1.bf16.msra.mxu0 0
  %212 = vmatprep.subr.bf16.mxu0 0
  %213 = vmatpush1.bf16.msra.mxu0 0
  %214 = vmatprep.subr.bf16.mxu0 0
  %215 = vmatpush1.bf16.msra.mxu0 0
  %216 = vmatprep.subr.bf16.mxu0 0
  %217 = vmatpush1.bf16.msra.mxu0 0
  %218 = vmatprep.subr.bf16.mxu0 0
  %219 = vmatpush1.bf16.msra.mxu0 0
  %220 = vmatprep.subr.bf16.mxu0 0
  %221 = vmatpush1.bf16.msra.mxu0 0
  %222 = vmatprep.subr.bf16.mxu0 0
  %223 = vmatpush1.bf16.msra.mxu0 0
  %224 = vmatprep.subr.bf16.mxu0 0
  %225 = vmatpush1.bf16.msra.mxu0 0
  %226 = vmatprep.subr.bf16.mxu0 0
  %227 = vmatpush1.bf16.msra.mxu0 0
  %228 = vmatprep.subr.bf16.mxu0 0
  %229 = vmatpush1.bf16.msra.mxu0 0
  %230 = vmatprep.mubr.bf16.mxu0 0
  %231 = vmatmul.mubr.bf16.gmra.mrb[0].mxu0 %v193
  %v232 = vpop.f32.mrb[0].mxu0
  %v233 = vadd.f32 %v175, %v232
  %v234 = vpop.f32.mrb[0].mxu0
  %v235 = vadd.f32 %v175, %v234
  %v236 = vpop.f32.mrb[0].mxu0
  %v237 = vadd.f32 %v180, %v236
  %v238 = vpop.f32.mrb[0].mxu0
  %v239 = vadd.f32 %v180, %v238
  %240 = vmatprep.mubr.bf16.mxu0 0
  %241 = vmatmul.mubr.bf16.gmra.mrb[0].mxu0 %v196
  %v242 = vpop.f32.mrb[0].mxu0
  %v243 = vadd.f32 %v185, %v242
  %v244 = vpop.f32.mrb[0].mxu0
  %v245 = vadd.f32 %v185, %v244
  %v246 = vpop.f32.mrb[0].mxu0
  %v247 = vadd.f32 %v190, %v246
  %v248 = vpop.f32.mrb[0].mxu0
  %v249 = vadd.f32 %v190, %v248
  %250 = vdwg.mxu0
  %v251 = vmax.f32 %v233, 0.0
  %v252 = vmax.f32 %v235, 0.0
  %v253 = vmax.f32 %v237, 0.0
  %v254 = vmax.f32 %v239, 0.0
  %v255 = vmax.f32 %v243, 0.0
  %v256 = vmax.f32 %v245, 0.0
  %v257 = vmax.f32 %v247, 0.0
  %v258 = vmax.f32 %v249, 0.0
  %v259 = vmax.f32 %v251, %v252
  %v260 = vmax.f32 %v253, %v254
  %v261 = vmax.f32 %v255, %v256
  %v262 = vmax.f32 %v257, %v258
  %267 = vrot.lane.b32.xlu0 %v259, 64
  %v268 = vpop.permute.xlu0 %267
  %269 = vrot.lane.b32.xlu0 %v260, 64
  %v270 = vpop.permute.xlu0 %269
  %271 = vrot.lane.b32.xlu0 %v261, 64
  %v272 = vpop.permute.xlu0 %271
  %273 = vrot.lane.b32.xlu0 %v262, 64
  %v274 = vpop.permute.xlu0 %273
  %v279 = vmax.f32 %v259, %v268
  %v280 = vmax.f32 %v260, %v270
  %v281 = vmax.f32 %v261, %v272
  %v282 = vmax.f32 %v262, %v274
  %287 = vrot.lane.b32.xlu0 %v279, 96
  %v288 = vpop.permute.xlu0 %287
  %289 = vrot.lane.b32.xlu0 %v280, 96
  %v290 = vpop.permute.xlu0 %289
  %291 = vrot.lane.b32.xlu0 %v281, 96
  %v292 = vpop.permute.xlu0 %291
  %293 = vrot.lane.b32.xlu0 %v282, 96
  %v294 = vpop.permute.xlu0 %293
  %v299 = vmax.f32 %v279, %v288
  %v300 = vmax.f32 %v280, %v290
  %v301 = vmax.f32 %v281, %v292
  %v302 = vmax.f32 %v282, %v294
  %vm303 = vcmask 261120
  %304 = vst.msk [vmem:[%s4] sm:$0xff] %vm303, %v299
  %305 = vst.msk [vmem:[%s4 + $0x8] sm:$0xff] %vm303, %v300
  %306 = vst.msk [vmem:[%s4 + $0x10] sm:$0xff] %vm303, %v301
  %307 = vst.msk [vmem:[%s4 + $0x18] sm:$0xff] %vm303, %v302
  %v308 = vld [vmem:[%s1] sm:$0xff]
  %v309 = vld [vmem:[%s1 + $0x8] sm:$0xff]
  %v310 = vld [vmem:[%s3] sm:$0xff]
  %v311 = vld [vmem:[%s3 + $0x8] sm:$0xff]
  %v312 = vpack.c.bf16 %v311, %v310
  %314 = vset.pattern.permute.xlu0 7
  %315 = vperm.xlu0 %314, %v310
  %v316 = vpop.permute.xlu0 %315
  %319 = vset.pattern.permute.xlu0 7
  %320 = vperm.xlu0 %319, %v311
  %v321 = vpop.permute.xlu0 %320
  %v325 = vunpack.c.l.b16 %v308
  %v326 = vunpack.c.h.b16 %v308
  %v327 = vunpack.c.l.b16 %v309
  %v328 = vunpack.c.h.b16 %v309
  %v329 = vpack.c.b16 %v325, %v325
  %v330 = vpack.c.b16 %v326, %v326
  %v331 = vpack.c.b16 %v327, %v327
  %v332 = vpack.c.b16 %v328, %v328
  %v334 = vsel %vm37, %v312, 0
  %v337 = vand.u32 %v329, %v44
  %v340 = vand.u32 %v330, %v44
  %v343 = vand.u32 %v331, %v44
  %v346 = vand.u32 %v332, %v44
  %348 = vmatprep.subr.bf16.mxu0 %v340
  %349 = vmatpush1.bf16.msra.mxu0 %v337
  %350 = vmatprep.subr.bf16.mxu0 0
  %351 = vmatpush1.bf16.msra.mxu0 0
  %352 = vmatprep.subr.bf16.mxu0 0
  %353 = vmatpush1.bf16.msra.mxu0 0
  %354 = vmatprep.subr.bf16.mxu0 0
  %355 = vmatpush1.bf16.msra.mxu0 0
  %356 = vmatprep.subr.bf16.mxu0 0
  %357 = vmatpush1.bf16.msra.mxu0 0
  %358 = vmatprep.subr.bf16.mxu0 0
  %359 = vmatpush1.bf16.msra.mxu0 0
  %360 = vmatprep.subr.bf16.mxu0 0
  %361 = vmatpush1.bf16.msra.mxu0 0
  %362 = vmatprep.subr.bf16.mxu0 0
  %363 = vmatpush1.bf16.msra.mxu0 0
  %364 = vmatprep.subr.bf16.mxu0 0
  %365 = vmatpush1.bf16.msra.mxu0 0
  %366 = vmatprep.subr.bf16.mxu0 0
  %367 = vmatpush1.bf16.msra.mxu0 0
  %368 = vmatprep.subr.bf16.mxu0 0
  %369 = vmatpush1.bf16.msra.mxu0 0
  %370 = vmatprep.subr.bf16.mxu0 0
  %371 = vmatpush1.bf16.msra.mxu0 0
  %372 = vmatprep.subr.bf16.mxu0 0
  %373 = vmatpush1.bf16.msra.mxu0 0
  %374 = vmatprep.subr.bf16.mxu0 0
  %375 = vmatpush1.bf16.msra.mxu0 0
  %376 = vmatprep.subr.bf16.mxu0 0
  %377 = vmatpush1.bf16.msra.mxu0 0
  %378 = vmatprep.subr.bf16.mxu0 0
  %379 = vmatpush1.bf16.msra.mxu0 0
  %380 = vmatprep.mubr.bf16.mxu0 0
  %381 = vmatmul.mubr.bf16.gmra.mrb[0].mxu0 %v334
  %v382 = vpop.f32.mrb[0].mxu0
  %v383 = vadd.f32 %v316, %v382
  %v384 = vpop.f32.mrb[0].mxu0
  %v385 = vadd.f32 %v316, %v384
  %v386 = vpop.f32.mrb[0].mxu0
  %v387 = vadd.f32 %v321, %v386
  %v388 = vpop.f32.mrb[0].mxu0
  %v389 = vadd.f32 %v321, %v388
  %390 = vdwg.mxu0
  %391 = vmatprep.subr.bf16.mxu0 %v346
  %392 = vmatpush1.bf16.msra.mxu0 %v343
  %393 = vmatprep.subr.bf16.mxu0 0
  %394 = vmatpush1.bf16.msra.mxu0 0
  %395 = vmatprep.subr.bf16.mxu0 0
  %396 = vmatpush1.bf16.msra.mxu0 0
  %397 = vmatprep.subr.bf16.mxu0 0
  %398 = vmatpush1.bf16.msra.mxu0 0
  %399 = vmatprep.subr.bf16.mxu0 0
  %400 = vmatpush1.bf16.msra.mxu0 0
  %401 = vmatprep.subr.bf16.mxu0 0
  %402 = vmatpush1.bf16.msra.mxu0 0
  %403 = vmatprep.subr.bf16.mxu0 0
  %404 = vmatpush1.bf16.msra.mxu0 0
  %405 = vmatprep.subr.bf16.mxu0 0
  %406 = vmatpush1.bf16.msra.mxu0 0
  %407 = vmatprep.subr.bf16.mxu0 0
  %408 = vmatpush1.bf16.msra.mxu0 0
  %409 = vmatprep.subr.bf16.mxu0 0
  %410 = vmatpush1.bf16.msra.mxu0 0
  %411 = vmatprep.subr.bf16.mxu0 0
  %412 = vmatpush1.bf16.msra.mxu0 0
  %413 = vmatprep.subr.bf16.mxu0 0
  %414 = vmatpush1.bf16.msra.mxu0 0
  %415 = vmatprep.subr.bf16.mxu0 0
  %416 = vmatpush1.bf16.msra.mxu0 0
  %417 = vmatprep.subr.bf16.mxu0 0
  %418 = vmatpush1.bf16.msra.mxu0 0
  %419 = vmatprep.subr.bf16.mxu0 0
  %420 = vmatpush1.bf16.msra.mxu0 0
  %421 = vmatprep.subr.bf16.mxu0 0
  %422 = vmatpush1.bf16.msra.mxu0 0
  %423 = vmatprep.mubr.bf16.mxu0 0
  %424 = vmatmul.mubr.bf16.gmra.mrb[0].mxu0 %v334
  %v425 = vpop.f32.mrb[0].mxu0
  %v426 = vadd.f32 %v316, %v425
  %v427 = vpop.f32.mrb[0].mxu0
  %v428 = vadd.f32 %v316, %v427
  %v429 = vpop.f32.mrb[0].mxu0
  %v430 = vadd.f32 %v321, %v429
  %v431 = vpop.f32.mrb[0].mxu0
  %v432 = vadd.f32 %v321, %v431
  %433 = vdwg.mxu0
  %v434 = vmax.f32 %v383, 0.0
  %v435 = vmax.f32 %v385, 0.0
  %v436 = vmax.f32 %v426, 0.0
  %v437 = vmax.f32 %v428, 0.0
  %v438 = vmax.f32 %v387, 0.0
  %v439 = vmax.f32 %v389, 0.0
  %v440 = vmax.f32 %v430, 0.0
  %v441 = vmax.f32 %v432, 0.0
  %v442 = vld [vmem:[%s3 + $0x10] sm:$0xff]
  %v443 = vld [vmem:[%s3 + $0x18] sm:$0xff]
  %v444 = vpack.c.bf16 %v443, %v442
  %v445 = vpack.c.bf16 %v438, %v434
  %v446 = vpack.c.bf16 %v439, %v435
  %v447 = vpack.c.bf16 %v440, %v436
  %v448 = vpack.c.bf16 %v441, %v437
  %450 = vset.pattern.permute.xlu0 16
  %451 = vperm.xlu0 %450, %v442
  %v452 = vpop.permute.xlu0 %451
  %455 = vset.pattern.permute.xlu0 16
  %456 = vperm.xlu0 %455, %v443
  %v457 = vpop.permute.xlu0 %456
  %v460 = vsel %vm113, %v444, 0
  %462 = vmatprep.subr.bf16.mxu0 %v446
  %463 = vmatpush1.bf16.msra.mxu0 %v445
  %464 = vmatprep.subr.bf16.mxu0 0
  %465 = vmatpush1.bf16.msra.mxu0 0
  %466 = vmatprep.subr.bf16.mxu0 0
  %467 = vmatpush1.bf16.msra.mxu0 0
  %468 = vmatprep.subr.bf16.mxu0 0
  %469 = vmatpush1.bf16.msra.mxu0 0
  %470 = vmatprep.subr.bf16.mxu0 0
  %471 = vmatpush1.bf16.msra.mxu0 0
  %472 = vmatprep.subr.bf16.mxu0 0
  %473 = vmatpush1.bf16.msra.mxu0 0
  %474 = vmatprep.subr.bf16.mxu0 0
  %475 = vmatpush1.bf16.msra.mxu0 0
  %476 = vmatprep.subr.bf16.mxu0 0
  %477 = vmatpush1.bf16.msra.mxu0 0
  %478 = vmatprep.subr.bf16.mxu0 0
  %479 = vmatpush1.bf16.msra.mxu0 0
  %480 = vmatprep.subr.bf16.mxu0 0
  %481 = vmatpush1.bf16.msra.mxu0 0
  %482 = vmatprep.subr.bf16.mxu0 0
  %483 = vmatpush1.bf16.msra.mxu0 0
  %484 = vmatprep.subr.bf16.mxu0 0
  %485 = vmatpush1.bf16.msra.mxu0 0
  %486 = vmatprep.subr.bf16.mxu0 0
  %487 = vmatpush1.bf16.msra.mxu0 0
  %488 = vmatprep.subr.bf16.mxu0 0
  %489 = vmatpush1.bf16.msra.mxu0 0
  %490 = vmatprep.subr.bf16.mxu0 0
  %491 = vmatpush1.bf16.msra.mxu0 0
  %492 = vmatprep.subr.bf16.mxu0 0
  %493 = vmatpush1.bf16.msra.mxu0 0
  %494 = vmatprep.mubr.bf16.mxu0 0
  %495 = vmatmul.mubr.bf16.gmra.mrb[0].mxu0 %v460
  %v496 = vpop.f32.mrb[0].mxu0
  %v497 = vadd.f32 %v452, %v496
  %v498 = vpop.f32.mrb[0].mxu0
  %v499 = vadd.f32 %v452, %v498
  %v500 = vpop.f32.mrb[0].mxu0
  %v501 = vadd.f32 %v457, %v500
  %v502 = vpop.f32.mrb[0].mxu0
  %v503 = vadd.f32 %v457, %v502
  %504 = vdwg.mxu0
  %505 = vmatprep.subr.bf16.mxu0 %v448
  %506 = vmatpush1.bf16.msra.mxu0 %v447
  %507 = vmatprep.subr.bf16.mxu0 0
  %508 = vmatpush1.bf16.msra.mxu0 0
  %509 = vmatprep.subr.bf16.mxu0 0
  %510 = vmatpush1.bf16.msra.mxu0 0
  %511 = vmatprep.subr.bf16.mxu0 0
  %512 = vmatpush1.bf16.msra.mxu0 0
  %513 = vmatprep.subr.bf16.mxu0 0
  %514 = vmatpush1.bf16.msra.mxu0 0
  %515 = vmatprep.subr.bf16.mxu0 0
  %516 = vmatpush1.bf16.msra.mxu0 0
  %517 = vmatprep.subr.bf16.mxu0 0
  %518 = vmatpush1.bf16.msra.mxu0 0
  %519 = vmatprep.subr.bf16.mxu0 0
  %520 = vmatpush1.bf16.msra.mxu0 0
  %521 = vmatprep.subr.bf16.mxu0 0
  %522 = vmatpush1.bf16.msra.mxu0 0
  %523 = vmatprep.subr.bf16.mxu0 0
  %524 = vmatpush1.bf16.msra.mxu0 0
  %525 = vmatprep.subr.bf16.mxu0 0
  %526 = vmatpush1.bf16.msra.mxu0 0
  %527 = vmatprep.subr.bf16.mxu0 0
  %528 = vmatpush1.bf16.msra.mxu0 0
  %529 = vmatprep.subr.bf16.mxu0 0
  %530 = vmatpush1.bf16.msra.mxu0 0
  %531 = vmatprep.subr.bf16.mxu0 0
  %532 = vmatpush1.bf16.msra.mxu0 0
  %533 = vmatprep.subr.bf16.mxu0 0
  %534 = vmatpush1.bf16.msra.mxu0 0
  %535 = vmatprep.subr.bf16.mxu0 0
  %536 = vmatpush1.bf16.msra.mxu0 0
  %537 = vmatprep.mubr.bf16.mxu0 0
  %538 = vmatmul.mubr.bf16.gmra.mrb[0].mxu0 %v460
  %v539 = vpop.f32.mrb[0].mxu0
  %v540 = vadd.f32 %v452, %v539
  %v541 = vpop.f32.mrb[0].mxu0
  %v542 = vadd.f32 %v452, %v541
  %v543 = vpop.f32.mrb[0].mxu0
  %v544 = vadd.f32 %v457, %v543
  %v545 = vpop.f32.mrb[0].mxu0
  %v546 = vadd.f32 %v457, %v545
  %547 = vdwg.mxu0
  %v548 = vmax.f32 %v497, 0.0
  %v549 = vmax.f32 %v499, 0.0
  %v550 = vmax.f32 %v540, 0.0
  %v551 = vmax.f32 %v542, 0.0
  %v552 = vmax.f32 %v501, 0.0
  %v553 = vmax.f32 %v503, 0.0
  %v554 = vmax.f32 %v544, 0.0
  %v555 = vmax.f32 %v546, 0.0
  %v556 = vld [vmem:[%s3 + $0x20] sm:$0xff]
  %v557 = vld [vmem:[%s3 + $0x28] sm:$0xff]
  %v558 = vld [vmem:[%s3 + $0x30] sm:$0xff]
  %v559 = vld [vmem:[%s3 + $0x38] sm:$0xff]
  %v560 = vpack.c.bf16 %v557, %v556
  %v561 = vpack.c.bf16 %v559, %v558
  %v562 = vpack.c.bf16 %v552, %v548
  %v563 = vpack.c.bf16 %v553, %v549
  %v564 = vpack.c.bf16 %v554, %v550
  %v565 = vpack.c.bf16 %v555, %v551
  %567 = vset.pattern.permute.xlu0 16
  %568 = vperm.xlu0 %567, %v556
  %v569 = vpop.permute.xlu0 %568
  %572 = vset.pattern.permute.xlu0 16
  %573 = vperm.xlu0 %572, %v557
  %v574 = vpop.permute.xlu0 %573
  %577 = vset.pattern.permute.xlu0 16
  %578 = vperm.xlu0 %577, %v558
  %v579 = vpop.permute.xlu0 %578
  %582 = vset.pattern.permute.xlu0 16
  %583 = vperm.xlu0 %582, %v559
  %v584 = vpop.permute.xlu0 %583
  %v587 = vsel %vm113, %v560, 0
  %v590 = vsel %vm113, %v561, 0
  %592 = vmatprep.subr.bf16.mxu0 %v563
  %593 = vmatpush1.bf16.msra.mxu0 %v562
  %594 = vmatprep.subr.bf16.mxu0 0
  %595 = vmatpush1.bf16.msra.mxu0 0
  %596 = vmatprep.subr.bf16.mxu0 0
  %597 = vmatpush1.bf16.msra.mxu0 0
  %598 = vmatprep.subr.bf16.mxu0 0
  %599 = vmatpush1.bf16.msra.mxu0 0
  %600 = vmatprep.subr.bf16.mxu0 0
  %601 = vmatpush1.bf16.msra.mxu0 0
  %602 = vmatprep.subr.bf16.mxu0 0
  %603 = vmatpush1.bf16.msra.mxu0 0
  %604 = vmatprep.subr.bf16.mxu0 0
  %605 = vmatpush1.bf16.msra.mxu0 0
  %606 = vmatprep.subr.bf16.mxu0 0
  %607 = vmatpush1.bf16.msra.mxu0 0
  %608 = vmatprep.subr.bf16.mxu0 0
  %609 = vmatpush1.bf16.msra.mxu0 0
  %610 = vmatprep.subr.bf16.mxu0 0
  %611 = vmatpush1.bf16.msra.mxu0 0
  %612 = vmatprep.subr.bf16.mxu0 0
  %613 = vmatpush1.bf16.msra.mxu0 0
  %614 = vmatprep.subr.bf16.mxu0 0
  %615 = vmatpush1.bf16.msra.mxu0 0
  %616 = vmatprep.subr.bf16.mxu0 0
  %617 = vmatpush1.bf16.msra.mxu0 0
  %618 = vmatprep.subr.bf16.mxu0 0
  %619 = vmatpush1.bf16.msra.mxu0 0
  %620 = vmatprep.subr.bf16.mxu0 0
  %621 = vmatpush1.bf16.msra.mxu0 0
  %622 = vmatprep.subr.bf16.mxu0 0
  %623 = vmatpush1.bf16.msra.mxu0 0
  %624 = vmatprep.mubr.bf16.mxu0 0
  %625 = vmatmul.mubr.bf16.gmra.mrb[0].mxu0 %v587
  %v626 = vpop.f32.mrb[0].mxu0
  %v627 = vadd.f32 %v569, %v626
  %v628 = vpop.f32.mrb[0].mxu0
  %v629 = vadd.f32 %v569, %v628
  %v630 = vpop.f32.mrb[0].mxu0
  %v631 = vadd.f32 %v574, %v630
  %v632 = vpop.f32.mrb[0].mxu0
  %v633 = vadd.f32 %v574, %v632
  %634 = vmatprep.mubr.bf16.mxu0 0
  %635 = vmatmul.mubr.bf16.gmra.mrb[0].mxu0 %v590
  %v636 = vpop.f32.mrb[0].mxu0
  %v637 = vadd.f32 %v579, %v636
  %v638 = vpop.f32.mrb[0].mxu0
  %v639 = vadd.f32 %v579, %v638
  %v640 = vpop.f32.mrb[0].mxu0
  %v641 = vadd.f32 %v584, %v640
  %v642 = vpop.f32.mrb[0].mxu0
  %v643 = vadd.f32 %v584, %v642
  %644 = vdwg.mxu0
  %645 = vmatprep.subr.bf16.mxu0 %v565
  %646 = vmatpush1.bf16.msra.mxu0 %v564
  %647 = vmatprep.subr.bf16.mxu0 0
  %648 = vmatpush1.bf16.msra.mxu0 0
  %649 = vmatprep.subr.bf16.mxu0 0
  %650 = vmatpush1.bf16.msra.mxu0 0
  %651 = vmatprep.subr.bf16.mxu0 0
  %652 = vmatpush1.bf16.msra.mxu0 0
  %653 = vmatprep.subr.bf16.mxu0 0
  %654 = vmatpush1.bf16.msra.mxu0 0
  %655 = vmatprep.subr.bf16.mxu0 0
  %656 = vmatpush1.bf16.msra.mxu0 0
  %657 = vmatprep.subr.bf16.mxu0 0
  %658 = vmatpush1.bf16.msra.mxu0 0
  %659 = vmatprep.subr.bf16.mxu0 0
  %660 = vmatpush1.bf16.msra.mxu0 0
  %661 = vmatprep.subr.bf16.mxu0 0
  %662 = vmatpush1.bf16.msra.mxu0 0
  %663 = vmatprep.subr.bf16.mxu0 0
  %664 = vmatpush1.bf16.msra.mxu0 0
  %665 = vmatprep.subr.bf16.mxu0 0
  %666 = vmatpush1.bf16.msra.mxu0 0
  %667 = vmatprep.subr.bf16.mxu0 0
  %668 = vmatpush1.bf16.msra.mxu0 0
  %669 = vmatprep.subr.bf16.mxu0 0
  %670 = vmatpush1.bf16.msra.mxu0 0
  %671 = vmatprep.subr.bf16.mxu0 0
  %672 = vmatpush1.bf16.msra.mxu0 0
  %673 = vmatprep.subr.bf16.mxu0 0
  %674 = vmatpush1.bf16.msra.mxu0 0
  %675 = vmatprep.subr.bf16.mxu0 0
  %676 = vmatpush1.bf16.msra.mxu0 0
  %677 = vmatprep.mubr.bf16.mxu0 0
  %678 = vmatmul.mubr.bf16.gmra.mrb[0].mxu0 %v587
  %v679 = vpop.f32.mrb[0].mxu0
  %v680 = vadd.f32 %v569, %v679
  %v681 = vpop.f32.mrb[0].mxu0
  %v682 = vadd.f32 %v569, %v681
  %v683 = vpop.f32.mrb[0].mxu0
  %v684 = vadd.f32 %v574, %v683
  %v685 = vpop.f32.mrb[0].mxu0
  %v686 = vadd.f32 %v574, %v685
  %687 = vmatprep.mubr.bf16.mxu0 0
  %688 = vmatmul.mubr.bf16.gmra.mrb[0].mxu0 %v590
  %v689 = vpop.f32.mrb[0].mxu0
  %v690 = vadd.f32 %v579, %v689
  %v691 = vpop.f32.mrb[0].mxu0
  %v692 = vadd.f32 %v579, %v691
  %v693 = vpop.f32.mrb[0].mxu0
  %v694 = vadd.f32 %v584, %v693
  %v695 = vpop.f32.mrb[0].mxu0
  %v696 = vadd.f32 %v584, %v695
  %697 = vdwg.mxu0
  %v698 = vmax.f32 %v627, 0.0
  %v699 = vmax.f32 %v629, 0.0
  %v700 = vmax.f32 %v680, 0.0
  %v701 = vmax.f32 %v682, 0.0
  %v702 = vmax.f32 %v631, 0.0
  %v703 = vmax.f32 %v633, 0.0
  %v704 = vmax.f32 %v684, 0.0
  %v705 = vmax.f32 %v686, 0.0
  %v706 = vmax.f32 %v637, 0.0
  %v707 = vmax.f32 %v639, 0.0
  %v708 = vmax.f32 %v690, 0.0
  %v709 = vmax.f32 %v692, 0.0
  %v710 = vmax.f32 %v641, 0.0
  %v711 = vmax.f32 %v643, 0.0
  %v712 = vmax.f32 %v694, 0.0
  %v713 = vmax.f32 %v696, 0.0
  %v714 = vmax.f32 %v698, %v700
  %v715 = vmax.f32 %v699, %v701
  %v716 = vmax.f32 %v702, %v704
  %v717 = vmax.f32 %v703, %v705
  %v718 = vmax.f32 %v706, %v708
  %v719 = vmax.f32 %v707, %v709
  %v720 = vmax.f32 %v710, %v712
  %v721 = vmax.f32 %v711, %v713
  %v722 = vmax.f32 %v714, %v715
  %v723 = vmax.f32 %v716, %v717
  %v724 = vmax.f32 %v718, %v719
  %v725 = vmax.f32 %v720, %v721
  %730 = vrot.lane.b32.xlu0 %v722, 64
  %v731 = vpop.permute.xlu0 %730
  %732 = vrot.lane.b32.xlu0 %v723, 64
  %v733 = vpop.permute.xlu0 %732
  %734 = vrot.lane.b32.xlu0 %v724, 64
  %v735 = vpop.permute.xlu0 %734
  %736 = vrot.lane.b32.xlu0 %v725, 64
  %v737 = vpop.permute.xlu0 %736
  %v742 = vmax.f32 %v722, %v731
  %v743 = vmax.f32 %v723, %v733
  %v744 = vmax.f32 %v724, %v735
  %v745 = vmax.f32 %v725, %v737
  %750 = vrot.lane.b32.xlu0 %v742, 96
  %v751 = vpop.permute.xlu0 %750
  %752 = vrot.lane.b32.xlu0 %v743, 96
  %v753 = vpop.permute.xlu0 %752
  %754 = vrot.lane.b32.xlu0 %v744, 96
  %v755 = vpop.permute.xlu0 %754
  %756 = vrot.lane.b32.xlu0 %v745, 96
  %v757 = vpop.permute.xlu0 %756
  %v762 = vmax.f32 %v742, %v751
  %v763 = vmax.f32 %v743, %v753
  %v764 = vmax.f32 %v744, %v755
  %v765 = vmax.f32 %v745, %v757
  %766 = vst.msk [vmem:[%s4 + $0x20] sm:$0xff] %vm303, %v762
  %767 = vst.msk [vmem:[%s4 + $0x28] sm:$0xff] %vm303, %v763
  %768 = vst.msk [vmem:[%s4 + $0x30] sm:$0xff] %vm303, %v764
  %769 = vst.msk [vmem:[%s4 + $0x38] sm:$0xff] %vm303, %v765
  // Predicated region
  $region18: #{tpu_custom_call.1} parent=0 // pred_check
    _
  $region19: #{tpu_custom_call.1} parent=0 // pred_check_branch
    %771 = sbr.rel (0) target = $region21
  $region20: #{tpu_custom_call.1} parent=0 // pred_region
    _
  $region21: #{tpu_custom_call.1} parent=0 // pred_fallthru
    _
  // Predicated region
  $region22: #{tpu_custom_call.1} parent=0 // pred_check
    _
  $region23: #{tpu_custom_call.1} parent=0 // pred_check_branch
    %773 = sbr.rel (0) target = $region25
  $region24: #{tpu_custom_call.1} parent=0 // pred_region
    _
  $region25: #{tpu_custom_call.1} parent=0 // pred_fallthru
    _

</llo_original>
